<compile_context>
chip_gen: v7x
topology: tpu7x:2x2x1
jax: 0.10.0
libtpu: 0.0.40
codegen_flags: <defaults>
</compile_context>

<pallas_src>
import math
import functools

import jax
import jax.numpy as jnp
from jax import lax
from jax.experimental import pallas as pl
from jax.experimental.pallas import tpu as pltpu


def _colorize_blur_kernel(palette_ref, idx_ref, band_w_ref, band_h_ref,
                          out_ref, stack_ref, *, width, height, num_colors):
    """One grid step = one batch element (only the per-batch work lives here)."""
    b = pl.program_id(0)
    idx = idx_ref[...]                              # (W, H) int32, batch-invariant
    base = b * (num_colors * 3)

    # ---- color LUT: random_colors[idx] as select-accumulate over colors ----
    # One (idx == c) mask per color, reused for all 3 channels; palette scalars
    # come from SMEM.  fori_loop bounds live ranges (no 48-way unroll).
    def body(c, carry):
        acc_r, acc_g, acc_b = carry
        m = (idx == c).astype(jnp.float32)
        off = base + c * 3
        acc_r = acc_r + m * palette_ref[off]
        acc_g = acc_g + m * palette_ref[off + 1]
        acc_b = acc_b + m * palette_ref[off + 2]
        return acc_r, acc_g, acc_b

    zeros = jnp.zeros((width, height), jnp.float32)
    accs = lax.fori_loop(0, num_colors, body, (zeros, zeros, zeros))

    # ---- uniform box blur (zero padding) as band-matrix matmuls ----
    #   blurred_ch = Bw @ acc_ch @ (Bh / k^2)
    # W-side matmul per channel, results stacked along sublanes into (3W, H)
    # scratch so the H-side matmul is one fused MXU call with M = 3W.
    band_w = band_w_ref[...]
    for ch, acc in enumerate(accs):
        stack_ref[pl.ds(ch * width, width), :] = jnp.dot(
            band_w, acc, preferred_element_type=jnp.float32)

    out_ref[0, :, :] = jnp.dot(stack_ref[...], band_h_ref[...],
                               preferred_element_type=jnp.float32)


def _bilinear_resize_nchw(img, out_h, out_w):
    # Matches torch F.interpolate(mode='bilinear', align_corners=False).
    _, _, in_h, in_w = img.shape

    def coords(out_size, in_size):
        scale = in_size / out_size
        d = jnp.arange(out_size, dtype=jnp.float32)
        src = jnp.maximum((d + 0.5) * scale - 0.5, 0.0)
        i0 = jnp.minimum(jnp.floor(src).astype(jnp.int32), in_size - 1)
        i1 = jnp.minimum(i0 + 1, in_size - 1)
        w1 = src - i0.astype(jnp.float32)
        return i0, i1, 1.0 - w1, w1

    r0, r1, wr0, wr1 = coords(out_h, in_h)
    c0, c1, wc0, wc1 = coords(out_w, in_w)
    rows = (img[:, :, r0, :] * wr0[None, None, :, None]
            + img[:, :, r1, :] * wr1[None, None, :, None])
    return rows[:, :, :, c0] * wc0 + rows[:, :, :, c1] * wc1


def cross_hatch_power_fractal(batch_size, width, height, key, *,
                              frequency=320, octaves=12, persistence=1.5,
                              num_colors=16, color_tolerance=0.05, blur=2,
                              brightness=0.0, contrast=0.0,
                              clamp_min=0.0, clamp_max=1.0):
    f32 = jnp.float32

    # ---- batch-invariant, separable noise (hoisted out of the kernel) ----
    # octave_noise(w, h) = gx_o(w) + gy_o(h), so noise = Nx(W) ⊕ Ny(H).
    freqs = jnp.array([float(frequency) * (2.0 ** o) for o in range(octaves)],
                      dtype=f32)
    weights = jnp.array([float(persistence) ** o for o in range(octaves)],
                        dtype=f32)

    def profile(n):
        lin = jnp.linspace(0.0, 1.0, n, dtype=f32)
        s = jnp.sin((lin[None, :] * freqs[:, None]) * math.pi)   # (octaves, n)
        s_min = jnp.min(s, axis=1, keepdims=True)
        s_max = jnp.max(s, axis=1, keepdims=True)
        # Matches torch per-octave normalization (NaN if max==min, same as torch).
        g = (s - s_min) / (s_max - s_min)
        return jnp.sum(g * weights[:, None], axis=0)             # (n,)

    nx = profile(width)                                          # (W,)
    ny = profile(height)                                         # (H,)
    noise = nx[:, None] + ny[None, :]                            # (W, H)
    noise = (noise - jnp.min(noise)) / (jnp.max(noise) - jnp.min(noise))
    # torch.round is half-to-even; values here are non-negative generic floats,
    # so floor(x + 0.5) only differs on exact .5 ties (measure-zero).
    idx = (noise * f32(num_colors - 1) + 0.5).astype(jnp.int32)  # (W, H)

    # ---- deterministic per-batch color palettes ----
    # TODO(synk): torch.Generator RNG stream (torch.rand with seed=seed+i)
    # cannot be reproduced bit-exactly in JAX; jax.random is used instead.
    palettes = jnp.stack(
        [jax.random.uniform(jax.random.fold_in(key, i), (num_colors, 3),
                            dtype=f32)
         for i in range(batch_size)], axis=0)
    palette_flat = palettes.reshape(-1)          # (B * num_colors * 3,)

    # ---- band matrices for the uniform (2*blur+1)^2 box blur, built once ----
    def band(n):
        r = jnp.arange(n)
        return (jnp.abs(r[:, None] - r[None, :]) <= blur).astype(f32)

    k = 2 * blur + 1
    band_w = band(width)
    band_h = band(height) * f32(1.0 / float(k * k))   # fold 1/k^2 in here

    kernel = functools.partial(_colorize_blur_kernel, width=width,
                               height=height, num_colors=num_colors)

    grid_spec = pltpu.PrefetchScalarGridSpec(
        num_scalar_prefetch=0,
        grid=(batch_size,),
        in_specs=[
            pl.BlockSpec(memory_space=pltpu.MemorySpace.SMEM),     # palettes (flat)
            pl.BlockSpec((width, height), lambda b: (0, 0)),       # idx (invariant)
            pl.BlockSpec((width, width), lambda b: (0, 0)),        # band_w
            pl.BlockSpec((height, height), lambda b: (0, 0)),      # band_h / k^2
        ],
        out_specs=pl.BlockSpec((1, 3 * width, height), lambda b: (b, 0, 0)),
        scratch_shapes=[pltpu.VMEM((3 * width, height), jnp.float32)],
    )

    # VMEM budget sized from the actual block footprint (double-buffered blocks
    # + scratch + live temporaries), clamped to the smallest physical VMEM (v7x).
    bpe = 4
    block_bytes = bpe * (width * height + width * width
                         + height * height + 3 * width * height)
    est = 2 * block_bytes + bpe * (3 * width * height + 8 * width * height)
    vmem_limit = int(min(max(est + (4 << 20), 32 << 20), 64 << 20))

    out = pl.pallas_call(
        kernel,
        out_shape=jax.ShapeDtypeStruct((batch_size, 3 * width, height),
                                       jnp.float32),
        grid_spec=grid_spec,
        compiler_params=pltpu.CompilerParams(
            dimension_semantics=("parallel",),   # grid steps are independent
            vmem_limit_bytes=vmem_limit),
    )(palette_flat, idx, band_w, band_h)

    # ---- glue: reshape, F.interpolate(size=(height,width), bilinear), permute,
    #      brightness/contrast, min/max normalize to [clamp_min, clamp_max] ----
    imgs = out.reshape(batch_size, 3, width, height)       # free reshape
    imgs = _bilinear_resize_nchw(imgs, height, width)      # (B, 3, height, width)
    imgs = jnp.transpose(imgs, (0, 2, 3, 1))               # (B, height, width, 3)
    imgs = (imgs + brightness) * (1.0 + contrast)
    mn, mx = jnp.min(imgs), jnp.max(imgs)
    return (imgs - mn) / (mx - mn) * (clamp_max - clamp_min) + clamp_min


if __name__ == "__main__":
    key = jax.random.PRNGKey(0)
    out = cross_hatch_power_fractal(batch_size=2, width=16, height=16, key=key)
    out = jax.block_until_ready(out)
    assert out.shape == (2, 16, 16, 3), out.shape
    assert out.dtype == jnp.float32
    assert bool(jnp.all(jnp.isfinite(out)))
    assert float(jnp.min(out)) >= -1e-6 and float(jnp.max(out)) <= 1.0 + 1e-6
    print("KERNEL_OK")
</pallas_src>

<mosaic_0001>
module attributes {stable_mosaic.version = 11 : i64} {
  func.func @_colorize_blur_kernel(%arg0: i32, %arg1: memref<96xf32, #tpu.memory_space<smem>>, %arg2: memref<16x16xi32, #tpu.memory_space<vmem>>, %arg3: memref<16x16xf32, #tpu.memory_space<vmem>>, %arg4: memref<16x16xf32, #tpu.memory_space<vmem>>, %arg5: memref<1x48x16xf32, #tpu.memory_space<vmem>>, %arg6: memref<48x16xf32, #tpu.memory_space<vmem>>) attributes {dimension_semantics = [#tpu.dimension_semantics<parallel>], iteration_bounds = array<i64: 2>, scalar_prefetch = 0 : i64, scratch_operands = 1 : i64, tpu.core_type = #tpu.core_type<tc>, window_params = [{transform_indices = @transform_0, window_bounds = array<i64: 96>}, {pipeline_mode = #tpu.pipeline_mode<synchronous>, transform_indices = @transform_1, window_bounds = array<i64: 16, 16>}, {pipeline_mode = #tpu.pipeline_mode<synchronous>, transform_indices = @transform_2, window_bounds = array<i64: 16, 16>}, {pipeline_mode = #tpu.pipeline_mode<synchronous>, transform_indices = @transform_3, window_bounds = array<i64: 16, 16>}, {transform_indices = @transform_4, window_bounds = array<i64: 1, 48, 16>}]} {
    %c0 = arith.constant 0 : index
    %c0_0 = arith.constant 0 : index
    %0 = vector.load %arg2[%c0, %c0_0] : memref<16x16xi32, #tpu.memory_space<vmem>>, vector<16x16xi32>
    %c48_i32 = arith.constant 48 : i32
    %1 = arith.muli %arg0, %c48_i32 : i32
    %cst = arith.constant 0.000000e+00 : f32
    %2 = vector.broadcast %cst : f32 to vector<16x16xf32>
    %c0_i32 = arith.constant 0 : i32
    %c16_i32 = arith.constant 16 : i32
    %3 = arith.addi %c0_i32, %c16_i32 : i32
    %c1_i32 = arith.constant 1 : i32
    %4:3 = scf.for %arg7 = %c0_i32 to %3 step %c1_i32 iter_args(%arg8 = %2, %arg9 = %2, %arg10 = %2) -> (vector<16x16xf32>, vector<16x16xf32>, vector<16x16xf32>)  : i32 {
      %18 = vector.broadcast %arg7 : i32 to vector<16x16xi32>
      %19 = arith.cmpi eq, %0, %18 : vector<16x16xi32>
      %20 = arith.extui %19 : vector<16x16xi1> to vector<16x16xi32>
      %21 = arith.sitofp %20 : vector<16x16xi32> to vector<16x16xf32>
      %c3_i32 = arith.constant 3 : i32
      %22 = arith.muli %arg7, %c3_i32 : i32
      %23 = arith.addi %1, %22 : i32
      %24 = arith.index_cast %23 : i32 to index
      %25 = memref.load %arg1[%24] : memref<96xf32, #tpu.memory_space<smem>>
      %26 = vector.broadcast %25 : f32 to vector<16x16xf32>
      %27 = arith.mulf %21, %26 : vector<16x16xf32>
      %28 = arith.addf %arg8, %27 : vector<16x16xf32>
      %c1_i32_19 = arith.constant 1 : i32
      %29 = arith.addi %23, %c1_i32_19 : i32
      %30 = arith.index_cast %29 : i32 to index
      %31 = memref.load %arg1[%30] : memref<96xf32, #tpu.memory_space<smem>>
      %32 = vector.broadcast %31 : f32 to vector<16x16xf32>
      %33 = arith.mulf %21, %32 : vector<16x16xf32>
      %34 = arith.addf %arg9, %33 : vector<16x16xf32>
      %c2_i32 = arith.constant 2 : i32
      %35 = arith.addi %23, %c2_i32 : i32
      %36 = arith.index_cast %35 : i32 to index
      %37 = memref.load %arg1[%36] : memref<96xf32, #tpu.memory_space<smem>>
      %38 = vector.broadcast %37 : f32 to vector<16x16xf32>
      %39 = arith.mulf %21, %38 : vector<16x16xf32>
      %40 = arith.addf %arg10, %39 : vector<16x16xf32>
      scf.yield %28, %34, %40 : vector<16x16xf32>, vector<16x16xf32>, vector<16x16xf32>
    }
    %c16_i32_1 = arith.constant 16 : i32
    %c0_2 = arith.constant 0 : index
    %c0_3 = arith.constant 0 : index
    %5 = vector.load %arg3[%c0_2, %c0_3] : memref<16x16xf32, #tpu.memory_space<vmem>>, vector<16x16xf32>
    %cst_4 = arith.constant dense<0.000000e+00> : vector<16x16xf32>
    %6 = tpu.matmul %5, %4#0, %cst_4 {dimension_numbers = #tpu.dot_dimension_numbers<[1], [0], [0], [1], [0, 0, 1, 1], [], []>} : vector<16x16xf32>, vector<16x16xf32>, vector<16x16xf32> -> vector<16x16xf32>
    %c0_5 = arith.constant 0 : index
    %c0_6 = arith.constant 0 : index
    %7 = vector.load %arg6[%c0_5, %c0_6] : memref<48x16xf32, #tpu.memory_space<vmem>>, vector<16x16xf32>
    tpu.vector_store %arg6[%c0_5, %c0_6], %6 {strides = array<i32>} : memref<48x16xf32, #tpu.memory_space<vmem>>, vector<16x16xf32>,
    %cst_7 = arith.constant dense<0.000000e+00> : vector<16x16xf32>
    %8 = tpu.matmul %5, %4#1, %cst_7 {dimension_numbers = #tpu.dot_dimension_numbers<[1], [0], [0], [1], [0, 0, 1, 1], [], []>} : vector<16x16xf32>, vector<16x16xf32>, vector<16x16xf32> -> vector<16x16xf32>
    %c16 = arith.constant 16 : index
    %c0_8 = arith.constant 0 : index
    %9 = vector.load %arg6[%c16, %c0_8] : memref<48x16xf32, #tpu.memory_space<vmem>>, vector<16x16xf32>
    tpu.vector_store %arg6[%c16, %c0_8], %8 {strides = array<i32>} : memref<48x16xf32, #tpu.memory_space<vmem>>, vector<16x16xf32>,
    %cst_9 = arith.constant dense<0.000000e+00> : vector<16x16xf32>
    %10 = tpu.matmul %5, %4#2, %cst_9 {dimension_numbers = #tpu.dot_dimension_numbers<[1], [0], [0], [1], [0, 0, 1, 1], [], []>} : vector<16x16xf32>, vector<16x16xf32>, vector<16x16xf32> -> vector<16x16xf32>
    %c32 = arith.constant 32 : index
    %c0_10 = arith.constant 0 : index
    %11 = vector.load %arg6[%c32, %c0_10] : memref<48x16xf32, #tpu.memory_space<vmem>>, vector<16x16xf32>
    tpu.vector_store %arg6[%c32, %c0_10], %10 {strides = array<i32>} : memref<48x16xf32, #tpu.memory_space<vmem>>, vector<16x16xf32>,
    %c0_11 = arith.constant 0 : index
    %c0_12 = arith.constant 0 : index
    %12 = vector.load %arg6[%c0_11, %c0_12] : memref<48x16xf32, #tpu.memory_space<vmem>>, vector<48x16xf32>
    %c0_13 = arith.constant 0 : index
    %c0_14 = arith.constant 0 : index
    %13 = vector.load %arg4[%c0_13, %c0_14] : memref<16x16xf32, #tpu.memory_space<vmem>>, vector<16x16xf32>
    %cst_15 = arith.constant dense<0.000000e+00> : vector<48x16xf32>
    %14 = tpu.matmul %12, %13, %cst_15 {dimension_numbers = #tpu.dot_dimension_numbers<[1], [0], [0], [1], [0, 0, 1, 1], [], []>} : vector<48x16xf32>, vector<16x16xf32>, vector<48x16xf32> -> vector<48x16xf32>
    %c0_16 = arith.constant 0 : index
    %c0_17 = arith.constant 0 : index
    %c0_18 = arith.constant 0 : index
    %15 = vector.load %arg5[%c0_16, %c0_17, %c0_18] : memref<1x48x16xf32, #tpu.memory_space<vmem>>, vector<1x48x16xf32>
    %16 = vector.shape_cast %15 : vector<1x48x16xf32> to vector<48x16xf32>
    %17 = vector.shape_cast %14 : vector<48x16xf32> to vector<1x48x16xf32>
    tpu.vector_store %arg5[%c0_16, %c0_17, %c0_18], %17 {strides = array<i32>} : memref<1x48x16xf32, #tpu.memory_space<vmem>>, vector<1x48x16xf32>,
    return
  }
  func.func @transform_0(%arg0: i32) -> i32 {
    %c0_i32 = arith.constant 0 : i32
    %c0_i32_0 = arith.constant 0 : i32
    return %c0_i32 : i32
  }
  func.func @transform_1(%arg0: i32) -> (i32, i32) {
    %c0_i32 = arith.constant 0 : i32
    %c0_i32_0 = arith.constant 0 : i32
    %c0_i32_1 = arith.constant 0 : i32
    return %c0_i32, %c0_i32_0 : i32, i32
  }
  func.func @transform_2(%arg0: i32) -> (i32, i32) {
    %c0_i32 = arith.constant 0 : i32
    %c0_i32_0 = arith.constant 0 : i32
    %c0_i32_1 = arith.constant 0 : i32
    return %c0_i32, %c0_i32_0 : i32, i32
  }
  func.func @transform_3(%arg0: i32) -> (i32, i32) {
    %c0_i32 = arith.constant 0 : i32
    %c0_i32_0 = arith.constant 0 : i32
    %c0_i32_1 = arith.constant 0 : i32
    return %c0_i32, %c0_i32_0 : i32, i32
  }
  func.func @transform_4(%arg0: i32) -> (i32, i32, i32) {
    %c0_i32 = arith.constant 0 : i32
    %c0_i32_0 = arith.constant 0 : i32
    %c0_i32_1 = arith.constant 0 : i32
    return %arg0, %c0_i32, %c0_i32_0 : i32, i32, i32
  }
}

</mosaic_0001>

<llo_original>
// kernel: tpu_custom_call.1
$region0: #{tpu_custom_call.1}
  #allocation0 [shape = 'u32[]', space=smem, size = 0x4, offset = 0x4, fixed_abs, tag = 'smem constant byte address 0x4 - core index']
  #allocation1 [shape = 'u32[144,128]{1,0:T(1,128)}', space=vmem, size = 0x12000, scoped, tag = 'internal scratch']
  #allocation2 [shape = 'f32[48,16]{1,0:T(8,128)}', space=vmem, size = 0x6000, scoped, tag = 'scratch operand']
  %s0 = inlined_call_operand.hbm [shape: f32[96], index: 0, kind: input, shape index: {}]
  %s1 = inlined_call_operand.hbm [shape: s32[16,16], index: 1, kind: input, shape index: {}]
  %s2 = inlined_call_operand.hbm [shape: f32[16,16], index: 2, kind: input, shape index: {}]
  %s3 = inlined_call_operand.hbm [shape: f32[16,16], index: 3, kind: input, shape index: {}]
  %s4 = inlined_call_operand.vmem [shape: f32[2,48,16], index: 4, kind: output, shape index: {}]
  %s5 = sld [smem:[#allocation0]]
  $region72: #{tpu_custom_call.1} parent=0
    _
  %s7 = ssub.s32 1, %s5
  %s8 = scalar_select 0, %s7, %s5
  $region1: #{tpu_custom_call.1} parent=0
    #allocation3 [shape = 'u8[512]{0}', space=smem, size = 0x200, scoped, tag = 'input window, operand 0, single buffered']
    #allocation4 [shape = 's32[2]{0}', space=sflag, size = 0x8, scoped, tag = 'scoped memory for tpu_custom_call.1']
    #allocation5 [shape = 's32[2]{0}', space=sflag, size = 0x8, scoped, tag = 'scoped memory for tpu_custom_call.1']
    #allocation6 [shape = 'u8[8192]{0}', space=vmem, size = 0x2000, scoped, tag = 'input window, operand 1, single buffered']
    #allocation7 [shape = 'u8[8192]{0}', space=vmem, size = 0x2000, scoped, tag = 'input window, operand 2, single buffered']
    #allocation8 [shape = 's32[1]{0}', space=sflag, size = 0x4, scoped, tag = 'scoped memory for tpu_custom_call.1']
    #allocation9 [shape = 'u8[8192]{0}', space=vmem, size = 0x2000, scoped, tag = 'input window, operand 3, single buffered']
    %9 = vsyncpa [#allocation5], 0
    %10 = vsyncpa [#allocation4], 0
    %11 = vsyncpa [#allocation8], 0
    loop: start=0, step=1, limit=4
    $region2: #{tpu_custom_call.1} parent=1 // loop_pre_header
      _
    $region3: #{tpu_custom_call.1} parent=1 // loop_header
      %s13 = sphi 0, %s17
      %p14 = scmp.ge.s32.totalorder %s13, 4
      %s21 = sphi 0, %s21
      %s23 = sphi 0, %s21
      %s24 = sphi 0, %s23
      %s38 = sphi 0, %s24
      %s42 = sphi 0, %s42
      %s44 = sphi 0, %s42
      %s45 = sphi 0, %s44
      %s59 = sphi 0, %s45
      %s63 = sphi 0, %s63
      %s65 = sphi 0, %s63
      %s66 = sphi 0, %s65
      %s80 = sphi 0, %s66
      %s84 = sphi 0, %s84
      %s86 = sphi 0, %s84
      %s87 = sphi 0, %s86
      %s101 = sphi 0, %s87
      %s107 = sphi 0, %s109
      %s110 = sphi 0, %s107
      %s111 = sphi 0, %s110
      %s127 = sphi 0, %s111
    $region4: #{tpu_custom_call.1} parent=1 // loop_header_branch
      %16 = sbr.rel (%p14) target = $region8
    $region5: #{tpu_custom_call.1} parent=1 // loop_body
      %s18 = ssub.s32 %s13, 1
      %s19 = ssub.s32 %s13, 2
      %s20 = sadd.s32 %s13, 1
      %s22 = sadd.s32 %s21, 1
      %p25 = scmp.eq.s32.totalorder %s13, 1
      %p26 = scmp.ne.s32.totalorder %s21, %s23
      %p27 = scmp.eq.s32.totalorder %s13, 0
      %p28 = por %p26, %p27
      %p29 = scmp.ne.s32.totalorder %s21, %s23
      %p30 = scmp.eq.s32.totalorder %s18, 1
      %p31 = por %p29, %p30
      %p32 = scmp.ne.s32.totalorder %s23, %s24
      %p33 = scmp.eq.s32.totalorder %s18, 0
      %p34 = por %p32, %p33
      %p35 = scmp.ne.s32.totalorder %s23, %s24
      %p36 = scmp.eq.s32.totalorder %s19, 1
      %p37 = por %p35, %p36
      %p39 = scmp.ne.s32.totalorder %s24, %s38
      %p40 = scmp.eq.s32.totalorder %s19, 0
      %p41 = por %p39, %p40
      %s43 = sadd.s32 %s42, 1
      %p46 = scmp.eq.s32.totalorder %s13, 1
      %p47 = scmp.ne.s32.totalorder %s42, %s44
      %p48 = scmp.eq.s32.totalorder %s13, 0
      %p49 = por %p47, %p48
      %p50 = scmp.ne.s32.totalorder %s42, %s44
      %p51 = scmp.eq.s32.totalorder %s18, 1
      %p52 = por %p50, %p51
      %p53 = scmp.ne.s32.totalorder %s44, %s45
      %p54 = scmp.eq.s32.totalorder %s18, 0
      %p55 = por %p53, %p54
      %p56 = scmp.ne.s32.totalorder %s44, %s45
      %p57 = scmp.eq.s32.totalorder %s19, 1
      %p58 = por %p56, %p57
      %p60 = scmp.ne.s32.totalorder %s45, %s59
      %p61 = scmp.eq.s32.totalorder %s19, 0
      %p62 = por %p60, %p61
      %s64 = sadd.s32 %s63, 1
      %p67 = scmp.eq.s32.totalorder %s13, 1
      %p68 = scmp.ne.s32.totalorder %s63, %s65
      %p69 = scmp.eq.s32.totalorder %s13, 0
      %p70 = por %p68, %p69
      %p71 = scmp.ne.s32.totalorder %s63, %s65
      %p72 = scmp.eq.s32.totalorder %s18, 1
      %p73 = por %p71, %p72
      %p74 = scmp.ne.s32.totalorder %s65, %s66
      %p75 = scmp.eq.s32.totalorder %s18, 0
      %p76 = por %p74, %p75
      %p77 = scmp.ne.s32.totalorder %s65, %s66
      %p78 = scmp.eq.s32.totalorder %s19, 1
      %p79 = por %p77, %p78
      %p81 = scmp.ne.s32.totalorder %s66, %s80
      %p82 = scmp.eq.s32.totalorder %s19, 0
      %p83 = por %p81, %p82
      %s85 = sadd.s32 %s84, 1
      %p88 = scmp.eq.s32.totalorder %s13, 1
      %p89 = scmp.ne.s32.totalorder %s84, %s86
      %p90 = scmp.eq.s32.totalorder %s13, 0
      %p91 = por %p89, %p90
      %p92 = scmp.ne.s32.totalorder %s84, %s86
      %p93 = scmp.eq.s32.totalorder %s18, 1
      %p94 = por %p92, %p93
      %p95 = scmp.ne.s32.totalorder %s86, %s87
      %p96 = scmp.eq.s32.totalorder %s18, 0
      %p97 = por %p95, %p96
      %p98 = scmp.ne.s32.totalorder %s86, %s87
      %p99 = scmp.eq.s32.totalorder %s19, 1
      %p100 = por %p98, %p99
      %p102 = scmp.ne.s32.totalorder %s87, %s101
      %p103 = scmp.eq.s32.totalorder %s19, 0
      %p104 = por %p102, %p103
      %s105 = ssub.s32 %s13, %s20
      %p106 = scmp.eq.s32.totalorder %s105, 0
      %s108 = sadd.s32 %s107, 1
      %s109 = scalar_select %p106, %s107, %s108
      %p112 = pneg %p106
      %p113 = scmp.eq.s32.totalorder %s13, 1
      %p114 = por %p112, %p113
      %p115 = scmp.ne.s32.totalorder %s107, %s110
      %p116 = scmp.eq.s32.totalorder %s13, 0
      %p117 = por %p115, %p116
      %p118 = scmp.ne.s32.totalorder %s107, %s110
      %p119 = scmp.eq.s32.totalorder %s18, 1
      %p120 = por %p118, %p119
      %p121 = scmp.ne.s32.totalorder %s110, %s111
      %p122 = scmp.eq.s32.totalorder %s18, 0
      %p123 = por %p121, %p122
      %p124 = scmp.ne.s32.totalorder %s110, %s111
      %p125 = scmp.eq.s32.totalorder %s19, 1
      %p126 = por %p124, %p125
      %p128 = scmp.ne.s32.totalorder %s111, %s127
      %p129 = scmp.eq.s32.totalorder %s19, 0
      %p130 = por %p128, %p129
      %p131 = scmp.le.s32.totalorder 1, %s13
      %p132 = scmp.lt.s32.totalorder %s13, 3
      %p133 = pnand %p131, %p132
      %p134 = pneg %p133
      // Predicated region
      $region9: #{tpu_custom_call.1} parent=5 // pred_check
        _
      $region10: #{tpu_custom_call.1} parent=5 // pred_check_branch
        %136 = sbr.rel (%p133) target = $region12
      $region11: #{tpu_custom_call.1} parent=5 // pred_region
        %s137 = ssub.s32 %s13, 1
        // Predicated region
        $region13: #{tpu_custom_call.1} parent=11 // pred_check
          %p138 = pneg %p34
        $region14: #{tpu_custom_call.1} parent=11 // pred_check_branch
          %140 = sbr.rel (%p138) target = $region16
        $region15: #{tpu_custom_call.1} parent=11 // pred_region
          %s142 = ssub.s32 16, 16
          %143 = vsyncadd [#allocation5], %s142
          %146 = dma.hbm_to_smem %s0, 16, [#allocation3], [#allocation5]
        $region16: #{tpu_custom_call.1} parent=11 // pred_fallthru
          _
        // Predicated region
        $region17: #{tpu_custom_call.1} parent=11 // pred_check
          %p147 = pneg %p55
        $region18: #{tpu_custom_call.1} parent=11 // pred_check_branch
          %149 = sbr.rel (%p147) target = $region20
        $region19: #{tpu_custom_call.1} parent=11 // pred_region
          %s151 = ssub.s32 256, 256
          %152 = vsyncadd [#allocation4], %s151
          %s153 = sshll.u32 [#allocation6], 4
          %s154 = int_to_ptr.vmem [resolvable:$true] %s153
          %159 = dma.hbm_to_vmem [thread:$0]  %s1, 256, %s154, [#allocation4], 128, 128, 8
        $region20: #{tpu_custom_call.1} parent=11 // pred_fallthru
          _
        // Predicated region
        $region21: #{tpu_custom_call.1} parent=11 // pred_check
          %p160 = pneg %p76
        $region22: #{tpu_custom_call.1} parent=11 // pred_check_branch
          %162 = sbr.rel (%p160) target = $region24
        $region23: #{tpu_custom_call.1} parent=11 // pred_region
          %s164 = ssub.s32 256, 256
          %165 = vsyncadd [#allocation8], %s164
          %s166 = sshll.u32 [#allocation7], 4
          %s167 = int_to_ptr.vmem [resolvable:$true] %s166
          %172 = dma.hbm_to_vmem [thread:$0]  %s2, 256, %s167, [#allocation8], 128, 128, 8
        $region24: #{tpu_custom_call.1} parent=11 // pred_fallthru
          _
        // Predicated region
        $region25: #{tpu_custom_call.1} parent=11 // pred_check
          %p173 = pneg %p97
        $region26: #{tpu_custom_call.1} parent=11 // pred_check_branch
          %175 = sbr.rel (%p173) target = $region28
        $region27: #{tpu_custom_call.1} parent=11 // pred_region
          %s177 = ssub.s32 256, 256
          %178 = vsyncadd [#allocation8], %s177
          %s179 = sshll.u32 [#allocation9], 4
          %s180 = int_to_ptr.vmem [resolvable:$true] %s179
          %185 = dma.hbm_to_vmem [thread:$0]  %s3, 256, %s180, [#allocation8], 128, 128, 8
        $region28: #{tpu_custom_call.1} parent=11 // pred_fallthru
          _
      $region12: #{tpu_custom_call.1} parent=5 // pred_fallthru
        _
      %p186 = scmp.lt.s32.totalorder %s13, 2
      // Predicated region
      $region29: #{tpu_custom_call.1} parent=5 // pred_check
        %p187 = pneg %p186
      $region30: #{tpu_custom_call.1} parent=5 // pred_check_branch
        %189 = sbr.rel (%p187) target = $region32
      $region31: #{tpu_custom_call.1} parent=5 // pred_region
        _
      $region32: #{tpu_custom_call.1} parent=5 // pred_fallthru
        _
      %p190 = scmp.le.s32.totalorder 1, %s13
      %p191 = scmp.lt.s32.totalorder %s13, 3
      %p192 = pnand %p190, %p191
      %p193 = pneg %p192
      // Predicated region
      $region33: #{tpu_custom_call.1} parent=5 // pred_check
        _
      $region34: #{tpu_custom_call.1} parent=5 // pred_check_branch
        %195 = sbr.rel (%p192) target = $region36
      $region35: #{tpu_custom_call.1} parent=5 // pred_region
        %s196 = ssub.s32 %s13, 1
        // Predicated region
        $region37: #{tpu_custom_call.1} parent=35 // pred_check
          %p197 = pneg %p34
        $region38: #{tpu_custom_call.1} parent=35 // pred_check_branch
          %199 = sbr.rel (%p197) target = $region40
        $region39: #{tpu_custom_call.1} parent=35 // pred_region
          %200 = dma.done [#allocation5], 16
        $region40: #{tpu_custom_call.1} parent=35 // pred_fallthru
          _
        // Predicated region
        $region41: #{tpu_custom_call.1} parent=35 // pred_check
          %p201 = pneg %p55
        $region42: #{tpu_custom_call.1} parent=35 // pred_check_branch
          %203 = sbr.rel (%p201) target = $region44
        $region43: #{tpu_custom_call.1} parent=35 // pred_region
          %204 = dma.done [#allocation4], 256
        $region44: #{tpu_custom_call.1} parent=35 // pred_fallthru
          _
        // Predicated region
        $region45: #{tpu_custom_call.1} parent=35 // pred_check
          %p205 = pneg %p76
        $region46: #{tpu_custom_call.1} parent=35 // pred_check_branch
          %207 = sbr.rel (%p205) target = $region48
        $region47: #{tpu_custom_call.1} parent=35 // pred_region
          %208 = dma.done [#allocation8], 256
        $region48: #{tpu_custom_call.1} parent=35 // pred_fallthru
          _
        // Predicated region
        $region49: #{tpu_custom_call.1} parent=35 // pred_check
          %p209 = pneg %p97
        $region50: #{tpu_custom_call.1} parent=35 // pred_check_branch
          %211 = sbr.rel (%p209) target = $region52
        $region51: #{tpu_custom_call.1} parent=35 // pred_region
          %212 = dma.done [#allocation8], 256
        $region52: #{tpu_custom_call.1} parent=35 // pred_fallthru
          _
        %213 = sfence
        %p214 = pneg %p34
        %p215 = pneg %p31
        %p216 = pneg %p55
        %p217 = pneg %p52
        %p218 = pneg %p76
        %p219 = pneg %p73
        %p220 = pneg %p97
        %p221 = pneg %p94
        %p222 = pneg %p123
        %p223 = pneg %p120
        %p224 = scmp.lt.s32.totalorder %s18, 1
        %s225 = scalar_select %p224, %s18, 1
        %s226 = smul.addr %s225, 6
        %s227 = smul.addr %s226, 8
        %s228 = scalar_lea.vmem %s4, %s227
        %p229 = scmp.lt.s32.totalorder %s18, 1
        %s230 = scalar_select %p229, %s18, 1
        %s231 = smul.addr %s230, 6
        %s232 = smul.addr %s231, 8
        %s233 = scalar_lea.vmem %s4, %s232
        %v234 = vld [vmem:[#allocation6] sm:$0xff]
        %v235 = vld [vmem:[#allocation6 + $0x8] sm:$0xff]
        %s236 = smul.u32 %s18, 48
        loop: start=0, step=1, limit=16
        $region53: #{tpu_custom_call.1} parent=35 // loop_pre_header
          _
        $region54: #{tpu_custom_call.1} parent=35 // loop_header
          %s238 = sphi 0, %s242
          %p239 = scmp.ge.s32.totalorder %s238, 16
          %v243 = vphi 0.0, %v262
          %v244 = vphi 0.0, %v263
          %v245 = vphi 0.0, %v269
          %v246 = vphi 0.0, %v270
          %v247 = vphi 0.0, %v276
          %v248 = vphi 0.0, %v277
        $region55: #{tpu_custom_call.1} parent=35 // loop_header_branch
          %241 = sbr.rel (%p239) target = $region59
        $region56: #{tpu_custom_call.1} parent=35 // loop_body
          %v249 = vstv %s238
          %vm250 = vcmp.eq.s32.totalorder %v234, %v249
          %vm251 = vcmp.eq.s32.totalorder %v235, %v249
          %v252 = vsel %vm250, 1, 0
          %v253 = vsel %vm251, 1, 0
          %v254 = vcvt.s32.f32 %v252
          %v255 = vcvt.s32.f32 %v253
          %s256 = smul.u32 %s238, 3
          %s257 = sadd.s32 %s236, %s256
          %s258 = sld [smem:[#allocation3 + %s257]]
          %v259 = vstv %s258
          %v260 = vmul.f32 %v254, %v259
          %v261 = vmul.f32 %v255, %v259
          %v262 = vadd.f32 %v243, %v260
          %v263 = vadd.f32 %v244, %v261
          %s264 = sadd.s32 %s257, 1
          %s265 = sld [smem:[#allocation3 + %s264]]
          %v266 = vstv %s265
          %v267 = vmul.f32 %v254, %v266
          %v268 = vmul.f32 %v255, %v266
          %v269 = vadd.f32 %v245, %v267
          %v270 = vadd.f32 %v246, %v268
          %s271 = sadd.s32 %s257, 2
          %s272 = sld [smem:[#allocation3 + %s271]]
          %v273 = vstv %s272
          %v274 = vmul.f32 %v254, %v273
          %v275 = vmul.f32 %v255, %v273
          %v276 = vadd.f32 %v247, %v274
          %v277 = vadd.f32 %v248, %v275
        $region57: #{tpu_custom_call.1} parent=35 // loop_footer
          %s242 = sadd.s32 1, %s238
        $region58: #{tpu_custom_call.1} parent=35 // loop_footer_branch
          %237 = sbr.rel target = $region54
        $region59: #{tpu_custom_call.1} parent=35 // loop_exit
          _
        %v278 = vld [vmem:[#allocation7] sm:$0xff]
        %v279 = vld [vmem:[#allocation7 + $0x8] sm:$0xff]
        %vm280 = vcmask 130048
        %v282 = vsel %vm280, %v278, 0
        %v285 = vsel %vm280, %v279, 0
        %287 = vmatprep.subr.mxu0 0.0
        %288 = vmatpush1.msra.mxu0 %v243
        %289 = vmatprep.subr.mxu0 0.0
        %290 = vmatpush1.msra.mxu0 %v244
        %291 = vmatprep.subr.mxu0 0.0
        %292 = vmatpush1.msra.mxu0 0.0
        %293 = vmatprep.subr.mxu0 0.0
        %294 = vmatpush1.msra.mxu0 0.0
        %295 = vmatprep.subr.mxu0 0.0
        %296 = vmatpush1.msra.mxu0 0.0
        %297 = vmatprep.subr.mxu0 0.0
        %298 = vmatpush1.msra.mxu0 0.0
        %299 = vmatprep.subr.mxu0 0.0
        %300 = vmatpush1.msra.mxu0 0.0
        %301 = vmatprep.subr.mxu0 0.0
        %302 = vmatpush1.msra.mxu0 0.0
        %303 = vmatprep.subr.mxu0 0.0
        %304 = vmatpush1.msra.mxu0 0.0
        %305 = vmatprep.subr.mxu0 0.0
        %306 = vmatpush1.msra.mxu0 0.0
        %307 = vmatprep.subr.mxu0 0.0
        %308 = vmatpush1.msra.mxu0 0.0
        %309 = vmatprep.subr.mxu0 0.0
        %310 = vmatpush1.msra.mxu0 0.0
        %311 = vmatprep.subr.mxu0 0.0
        %312 = vmatpush1.msra.mxu0 0.0
        %313 = vmatprep.subr.mxu0 0.0
        %314 = vmatpush1.msra.mxu0 0.0
        %315 = vmatprep.subr.mxu0 0.0
        %316 = vmatpush1.msra.mxu0 0.0
        %317 = vmatprep.subr.mxu0 0.0
        %318 = vmatpush1.msra.mxu0 0.0
        %319 = vmatprep.subr.mxu0 0.0
        %320 = vmatpush1.msra.mxu0 0.0
        %321 = vmatprep.subr.mxu0 0.0
        %322 = vmatpush1.msra.mxu0 0.0
        %323 = vmatprep.subr.mxu0 0.0
        %324 = vmatpush1.msra.mxu0 0.0
        %325 = vmatprep.subr.mxu0 0.0
        %326 = vmatpush1.msra.mxu0 0.0
        %327 = vmatprep.subr.mxu0 0.0
        %328 = vmatpush1.msra.mxu0 0.0
        %329 = vmatprep.subr.mxu0 0.0
        %330 = vmatpush1.msra.mxu0 0.0
        %331 = vmatprep.subr.mxu0 0.0
        %332 = vmatpush1.msra.mxu0 0.0
        %333 = vmatprep.subr.mxu0 0.0
        %334 = vmatpush1.msra.mxu0 0.0
        %335 = vmatprep.subr.mxu0 0.0
        %336 = vmatpush1.msra.mxu0 0.0
        %337 = vmatprep.subr.mxu0 0.0
        %338 = vmatpush1.msra.mxu0 0.0
        %339 = vmatprep.subr.mxu0 0.0
        %340 = vmatpush1.msra.mxu0 0.0
        %341 = vmatprep.subr.mxu0 0.0
        %342 = vmatpush1.msra.mxu0 0.0
        %343 = vmatprep.subr.mxu0 0.0
        %344 = vmatpush1.msra.mxu0 0.0
        %345 = vmatprep.subr.mxu0 0.0
        %346 = vmatpush1.msra.mxu0 0.0
        %347 = vmatprep.subr.mxu0 0.0
        %348 = vmatpush1.msra.mxu0 0.0
        %349 = vmatprep.subr.mxu0 0.0
        %350 = vmatpush1.msra.mxu0 0.0
        %351 = vmatprep.mubr.f32.mxu0 0.0
        %352 = vmatmul.mubr.f32.gmra.mrb[0].mxu0 %v282
        %v353 = vpop.f32.mrb[0].mxu0
        %v354 = vadd.f32 0.0, %v353
        %v355 = vpop.f32.mrb[0].mxu0
        %356 = vmatprep.mubr.f32.mxu0 0.0
        %357 = vmatmul.mubr.f32.gmra.mrb[0].mxu0 %v285
        %v358 = vpop.f32.mrb[0].mxu0
        %v359 = vadd.f32 0.0, %v358
        %v360 = vpop.f32.mrb[0].mxu0
        %361 = vdwg.mxu0
        %362 = vst.msk [vmem:[#allocation2] sm:$0xff] %vm280, %v354
        %363 = vst.msk [vmem:[#allocation2 + $0x8] sm:$0xff] %vm280, %v359
        %364 = vmatprep.subr.mxu0 0.0
        %365 = vmatpush1.msra.mxu0 %v245
        %366 = vmatprep.subr.mxu0 0.0
        %367 = vmatpush1.msra.mxu0 %v246
        %368 = vmatprep.subr.mxu0 0.0
        %369 = vmatpush1.msra.mxu0 0.0
        %370 = vmatprep.subr.mxu0 0.0
        %371 = vmatpush1.msra.mxu0 0.0
        %372 = vmatprep.subr.mxu0 0.0
        %373 = vmatpush1.msra.mxu0 0.0
        %374 = vmatprep.subr.mxu0 0.0
        %375 = vmatpush1.msra.mxu0 0.0
        %376 = vmatprep.subr.mxu0 0.0
        %377 = vmatpush1.msra.mxu0 0.0
        %378 = vmatprep.subr.mxu0 0.0
        %379 = vmatpush1.msra.mxu0 0.0
        %380 = vmatprep.subr.mxu0 0.0
        %381 = vmatpush1.msra.mxu0 0.0
        %382 = vmatprep.subr.mxu0 0.0
        %383 = vmatpush1.msra.mxu0 0.0
        %384 = vmatprep.subr.mxu0 0.0
        %385 = vmatpush1.msra.mxu0 0.0
        %386 = vmatprep.subr.mxu0 0.0
        %387 = vmatpush1.msra.mxu0 0.0
        %388 = vmatprep.subr.mxu0 0.0
        %389 = vmatpush1.msra.mxu0 0.0
        %390 = vmatprep.subr.mxu0 0.0
        %391 = vmatpush1.msra.mxu0 0.0
        %392 = vmatprep.subr.mxu0 0.0
        %393 = vmatpush1.msra.mxu0 0.0
        %394 = vmatprep.subr.mxu0 0.0
        %395 = vmatpush1.msra.mxu0 0.0
        %396 = vmatprep.subr.mxu0 0.0
        %397 = vmatpush1.msra.mxu0 0.0
        %398 = vmatprep.subr.mxu0 0.0
        %399 = vmatpush1.msra.mxu0 0.0
        %400 = vmatprep.subr.mxu0 0.0
        %401 = vmatpush1.msra.mxu0 0.0
        %402 = vmatprep.subr.mxu0 0.0
        %403 = vmatpush1.msra.mxu0 0.0
        %404 = vmatprep.subr.mxu0 0.0
        %405 = vmatpush1.msra.mxu0 0.0
        %406 = vmatprep.subr.mxu0 0.0
        %407 = vmatpush1.msra.mxu0 0.0
        %408 = vmatprep.subr.mxu0 0.0
        %409 = vmatpush1.msra.mxu0 0.0
        %410 = vmatprep.subr.mxu0 0.0
        %411 = vmatpush1.msra.mxu0 0.0
        %412 = vmatprep.subr.mxu0 0.0
        %413 = vmatpush1.msra.mxu0 0.0
        %414 = vmatprep.subr.mxu0 0.0
        %415 = vmatpush1.msra.mxu0 0.0
        %416 = vmatprep.subr.mxu0 0.0
        %417 = vmatpush1.msra.mxu0 0.0
        %418 = vmatprep.subr.mxu0 0.0
        %419 = vmatpush1.msra.mxu0 0.0
        %420 = vmatprep.subr.mxu0 0.0
        %421 = vmatpush1.msra.mxu0 0.0
        %422 = vmatprep.subr.mxu0 0.0
        %423 = vmatpush1.msra.mxu0 0.0
        %424 = vmatprep.subr.mxu0 0.0
        %425 = vmatpush1.msra.mxu0 0.0
        %426 = vmatprep.subr.mxu0 0.0
        %427 = vmatpush1.msra.mxu0 0.0
        %428 = vmatprep.mubr.f32.mxu0 0.0
        %429 = vmatmul.mubr.f32.gmra.mrb[0].mxu0 %v282
        %v430 = vpop.f32.mrb[0].mxu0
        %v431 = vadd.f32 0.0, %v430
        %v432 = vpop.f32.mrb[0].mxu0
        %433 = vmatprep.mubr.f32.mxu0 0.0
        %434 = vmatmul.mubr.f32.gmra.mrb[0].mxu0 %v285
        %v435 = vpop.f32.mrb[0].mxu0
        %v436 = vadd.f32 0.0, %v435
        %v437 = vpop.f32.mrb[0].mxu0
        %438 = vdwg.mxu0
        %439 = vst.msk [vmem:[#allocation2 + $0x10] sm:$0xff] %vm280, %v431
        %440 = vst.msk [vmem:[#allocation2 + $0x18] sm:$0xff] %vm280, %v436
        %441 = vmatprep.subr.mxu0 0.0
        %442 = vmatpush1.msra.mxu0 %v247
        %443 = vmatprep.subr.mxu0 0.0
        %444 = vmatpush1.msra.mxu0 %v248
        %445 = vmatprep.subr.mxu0 0.0
        %446 = vmatpush1.msra.mxu0 0.0
        %447 = vmatprep.subr.mxu0 0.0
        %448 = vmatpush1.msra.mxu0 0.0
        %449 = vmatprep.subr.mxu0 0.0
        %450 = vmatpush1.msra.mxu0 0.0
        %451 = vmatprep.subr.mxu0 0.0
        %452 = vmatpush1.msra.mxu0 0.0
        %453 = vmatprep.subr.mxu0 0.0
        %454 = vmatpush1.msra.mxu0 0.0
        %455 = vmatprep.subr.mxu0 0.0
        %456 = vmatpush1.msra.mxu0 0.0
        %457 = vmatprep.subr.mxu0 0.0
        %458 = vmatpush1.msra.mxu0 0.0
        %459 = vmatprep.subr.mxu0 0.0
        %460 = vmatpush1.msra.mxu0 0.0
        %461 = vmatprep.subr.mxu0 0.0
        %462 = vmatpush1.msra.mxu0 0.0
        %463 = vmatprep.subr.mxu0 0.0
        %464 = vmatpush1.msra.mxu0 0.0
        %465 = vmatprep.subr.mxu0 0.0
        %466 = vmatpush1.msra.mxu0 0.0
        %467 = vmatprep.subr.mxu0 0.0
        %468 = vmatpush1.msra.mxu0 0.0
        %469 = vmatprep.subr.mxu0 0.0
        %470 = vmatpush1.msra.mxu0 0.0
        %471 = vmatprep.subr.mxu0 0.0
        %472 = vmatpush1.msra.mxu0 0.0
        %473 = vmatprep.subr.mxu0 0.0
        %474 = vmatpush1.msra.mxu0 0.0
        %475 = vmatprep.subr.mxu0 0.0
        %476 = vmatpush1.msra.mxu0 0.0
        %477 = vmatprep.subr.mxu0 0.0
        %478 = vmatpush1.msra.mxu0 0.0
        %479 = vmatprep.subr.mxu0 0.0
        %480 = vmatpush1.msra.mxu0 0.0
        %481 = vmatprep.subr.mxu0 0.0
        %482 = vmatpush1.msra.mxu0 0.0
        %483 = vmatprep.subr.mxu0 0.0
        %484 = vmatpush1.msra.mxu0 0.0
        %485 = vmatprep.subr.mxu0 0.0
        %486 = vmatpush1.msra.mxu0 0.0
        %487 = vmatprep.subr.mxu0 0.0
        %488 = vmatpush1.msra.mxu0 0.0
        %489 = vmatprep.subr.mxu0 0.0
        %490 = vmatpush1.msra.mxu0 0.0
        %491 = vmatprep.subr.mxu0 0.0
        %492 = vmatpush1.msra.mxu0 0.0
        %493 = vmatprep.subr.mxu0 0.0
        %494 = vmatpush1.msra.mxu0 0.0
        %495 = vmatprep.subr.mxu0 0.0
        %496 = vmatpush1.msra.mxu0 0.0
        %497 = vmatprep.subr.mxu0 0.0
        %498 = vmatpush1.msra.mxu0 0.0
        %499 = vmatprep.subr.mxu0 0.0
        %500 = vmatpush1.msra.mxu0 0.0
        %501 = vmatprep.subr.mxu0 0.0
        %502 = vmatpush1.msra.mxu0 0.0
        %503 = vmatprep.subr.mxu0 0.0
        %504 = vmatpush1.msra.mxu0 0.0
        %505 = vmatprep.mubr.f32.mxu0 0.0
        %506 = vmatmul.mubr.f32.gmra.mrb[0].mxu0 %v282
        %v507 = vpop.f32.mrb[0].mxu0
        %v508 = vadd.f32 0.0, %v507
        %v509 = vpop.f32.mrb[0].mxu0
        %510 = vmatprep.mubr.f32.mxu0 0.0
        %511 = vmatmul.mubr.f32.gmra.mrb[0].mxu0 %v285
        %v512 = vpop.f32.mrb[0].mxu0
        %v513 = vadd.f32 0.0, %v512
        %v514 = vpop.f32.mrb[0].mxu0
        %515 = vdwg.mxu0
        %516 = vst.msk [vmem:[#allocation2 + $0x20] sm:$0xff] %vm280, %v508
        %517 = vst.msk [vmem:[#allocation2 + $0x28] sm:$0xff] %vm280, %v513
        %v518 = vld [vmem:[#allocation2] sm:$0xff]
        %v519 = vld [vmem:[#allocation2 + $0x8] sm:$0xff]
        %v520 = vld [vmem:[#allocation2 + $0x10] sm:$0xff]
        %v521 = vld [vmem:[#allocation2 + $0x18] sm:$0xff]
        %v522 = vld [vmem:[#allocation2 + $0x20] sm:$0xff]
        %v523 = vld [vmem:[#allocation2 + $0x28] sm:$0xff]
        %v524 = vld [vmem:[#allocation9] sm:$0xff]
        %v525 = vld [vmem:[#allocation9 + $0x8] sm:$0xff]
        %v527 = vsel %vm280, %v518, 0
        %v530 = vsel %vm280, %v519, 0
        %v533 = vsel %vm280, %v520, 0
        %v536 = vsel %vm280, %v521, 0
        %v539 = vsel %vm280, %v522, 0
        %v542 = vsel %vm280, %v523, 0
        %544 = vmatprep.subr.mxu0 0.0
        %545 = vmatpush1.msra.mxu0 %v524
        %546 = vmatprep.subr.mxu0 0.0
        %547 = vmatpush1.msra.mxu0 %v525
        %548 = vmatprep.subr.mxu0 0.0
        %549 = vmatpush1.msra.mxu0 0.0
        %550 = vmatprep.subr.mxu0 0.0
        %551 = vmatpush1.msra.mxu0 0.0
        %552 = vmatprep.subr.mxu0 0.0
        %553 = vmatpush1.msra.mxu0 0.0
        %554 = vmatprep.subr.mxu0 0.0
        %555 = vmatpush1.msra.mxu0 0.0
        %556 = vmatprep.subr.mxu0 0.0
        %557 = vmatpush1.msra.mxu0 0.0
        %558 = vmatprep.subr.mxu0 0.0
        %559 = vmatpush1.msra.mxu0 0.0
        %560 = vmatprep.subr.mxu0 0.0
        %561 = vmatpush1.msra.mxu0 0.0
        %562 = vmatprep.subr.mxu0 0.0
        %563 = vmatpush1.msra.mxu0 0.0
        %564 = vmatprep.subr.mxu0 0.0
        %565 = vmatpush1.msra.mxu0 0.0
        %566 = vmatprep.subr.mxu0 0.0
        %567 = vmatpush1.msra.mxu0 0.0
        %568 = vmatprep.subr.mxu0 0.0
        %569 = vmatpush1.msra.mxu0 0.0
        %570 = vmatprep.subr.mxu0 0.0
        %571 = vmatpush1.msra.mxu0 0.0
        %572 = vmatprep.subr.mxu0 0.0
        %573 = vmatpush1.msra.mxu0 0.0
        %574 = vmatprep.subr.mxu0 0.0
        %575 = vmatpush1.msra.mxu0 0.0
        %576 = vmatprep.subr.mxu0 0.0
        %577 = vmatpush1.msra.mxu0 0.0
        %578 = vmatprep.subr.mxu0 0.0
        %579 = vmatpush1.msra.mxu0 0.0
        %580 = vmatprep.subr.mxu0 0.0
        %581 = vmatpush1.msra.mxu0 0.0
        %582 = vmatprep.subr.mxu0 0.0
        %583 = vmatpush1.msra.mxu0 0.0
        %584 = vmatprep.subr.mxu0 0.0
        %585 = vmatpush1.msra.mxu0 0.0
        %586 = vmatprep.subr.mxu0 0.0
        %587 = vmatpush1.msra.mxu0 0.0
        %588 = vmatprep.subr.mxu0 0.0
        %589 = vmatpush1.msra.mxu0 0.0
        %590 = vmatprep.subr.mxu0 0.0
        %591 = vmatpush1.msra.mxu0 0.0
        %592 = vmatprep.subr.mxu0 0.0
        %593 = vmatpush1.msra.mxu0 0.0
        %594 = vmatprep.subr.mxu0 0.0
        %595 = vmatpush1.msra.mxu0 0.0
        %596 = vmatprep.subr.mxu0 0.0
        %597 = vmatpush1.msra.mxu0 0.0
        %598 = vmatprep.subr.mxu0 0.0
        %599 = vmatpush1.msra.mxu0 0.0
        %600 = vmatprep.subr.mxu0 0.0
        %601 = vmatpush1.msra.mxu0 0.0
        %602 = vmatprep.subr.mxu0 0.0
        %603 = vmatpush1.msra.mxu0 0.0
        %604 = vmatprep.subr.mxu0 0.0
        %605 = vmatpush1.msra.mxu0 0.0
        %606 = vmatprep.subr.mxu0 0.0
        %607 = vmatpush1.msra.mxu0 0.0
        %608 = vmatprep.mubr.f32.mxu0 0.0
        %609 = vmatmul.mubr.f32.gmra.mrb[0].mxu0 %v527
        %v610 = vpop.f32.mrb[0].mxu0
        %v611 = vadd.f32 0.0, %v610
        %v612 = vpop.f32.mrb[0].mxu0
        %613 = vmatprep.mubr.f32.mxu0 0.0
        %614 = vmatmul.mubr.f32.gmra.mrb[0].mxu0 %v530
        %v615 = vpop.f32.mrb[0].mxu0
        %v616 = vadd.f32 0.0, %v615
        %v617 = vpop.f32.mrb[0].mxu0
        %618 = vmatprep.mubr.f32.mxu0 0.0
        %619 = vmatmul.mubr.f32.gmra.mrb[0].mxu0 %v533
        %v620 = vpop.f32.mrb[0].mxu0
        %v621 = vadd.f32 0.0, %v620
        %v622 = vpop.f32.mrb[0].mxu0
        %623 = vmatprep.mubr.f32.mxu0 0.0
        %624 = vmatmul.mubr.f32.gmra.mrb[0].mxu0 %v536
        %v625 = vpop.f32.mrb[0].mxu0
        %v626 = vadd.f32 0.0, %v625
        %v627 = vpop.f32.mrb[0].mxu0
        %628 = vmatprep.mubr.f32.mxu0 0.0
        %629 = vmatmul.mubr.f32.gmra.mrb[0].mxu0 %v539
        %v630 = vpop.f32.mrb[0].mxu0
        %v631 = vadd.f32 0.0, %v630
        %v632 = vpop.f32.mrb[0].mxu0
        %633 = vmatprep.mubr.f32.mxu0 0.0
        %634 = vmatmul.mubr.f32.gmra.mrb[0].mxu0 %v542
        %v635 = vpop.f32.mrb[0].mxu0
        %v636 = vadd.f32 0.0, %v635
        %v637 = vpop.f32.mrb[0].mxu0
        %638 = vdwg.mxu0
        %639 = vst.msk [vmem:[%s233] sm:$0xff] %vm280, %v611
        %640 = vst.msk [vmem:[%s233 + $0x8] sm:$0xff] %vm280, %v616
        %641 = vst.msk [vmem:[%s233 + $0x10] sm:$0xff] %vm280, %v621
        %642 = vst.msk [vmem:[%s233 + $0x18] sm:$0xff] %vm280, %v626
        %643 = vst.msk [vmem:[%s233 + $0x20] sm:$0xff] %vm280, %v631
        %644 = vst.msk [vmem:[%s233 + $0x28] sm:$0xff] %vm280, %v636
        %p645 = scmp.lt.s32.totalorder %s18, 1
        %s646 = scalar_select %p645, %s18, 1
        %s647 = smul.addr %s646, 6
        %s648 = smul.addr %s647, 8
        %s649 = scalar_lea.vmem %s4, %s648
        // Predicated region
        $region60: #{tpu_custom_call.1} parent=35 // pred_check
          %p650 = pneg %p120
        $region61: #{tpu_custom_call.1} parent=35 // pred_check_branch
          %652 = sbr.rel (%p650) target = $region63
        $region62: #{tpu_custom_call.1} parent=35 // pred_region
          _
        $region63: #{tpu_custom_call.1} parent=35 // pred_fallthru
          _
      $region36: #{tpu_custom_call.1} parent=5 // pred_fallthru
        _
      %p653 = scmp.le.s32.totalorder 2, %s13
      // Predicated region
      $region64: #{tpu_custom_call.1} parent=5 // pred_check
        %p654 = pneg %p653
      $region65: #{tpu_custom_call.1} parent=5 // pred_check_branch
        %656 = sbr.rel (%p654) target = $region67
      $region66: #{tpu_custom_call.1} parent=5 // pred_region
        %s657 = ssub.s32 %s13, 2
        // Predicated region
        $region68: #{tpu_custom_call.1} parent=66 // pred_check
          %p658 = pneg %p126
        $region69: #{tpu_custom_call.1} parent=66 // pred_check_branch
          %660 = sbr.rel (%p658) target = $region71
        $region70: #{tpu_custom_call.1} parent=66 // pred_region
          %p661 = scmp.lt.s32.totalorder %s19, 1
          %s662 = scalar_select %p661, %s19, 1
          %s663 = smul.addr %s662, 6
          %s664 = smul.addr %s663, 8
          %s665 = scalar_lea.vmem %s4, %s664
        $region71: #{tpu_custom_call.1} parent=66 // pred_fallthru
          _
      $region67: #{tpu_custom_call.1} parent=5 // pred_fallthru
        _
    $region6: #{tpu_custom_call.1} parent=1 // loop_footer
      %s17 = sadd.s32 1, %s13
    $region7: #{tpu_custom_call.1} parent=1 // loop_footer_branch
      %12 = sbr.rel target = $region3
    $region8: #{tpu_custom_call.1} parent=1 // loop_exit
      _
    %666 = vsyncpa [#allocation4], 1
    %s667 = scalar_lea.sflag [#allocation4], 1
    %668 = vsyncpa %s667, 1
    %669 = vsyncpa [#allocation8], 1
    %670 = vsyncpa [#allocation5], 1
    %s671 = scalar_lea.sflag [#allocation5], 1
    %672 = vsyncpa %s671, 1

</llo_original>
